<compile_context>
chip_gen: v7x
topology: tpu7x:2x2x1
jax: 0.10.0
libtpu: 0.0.40
codegen_flags: <defaults>
</compile_context>

<pallas_src>
import functools

import jax
import jax.numpy as jnp
from jax import lax
from jax.experimental import pallas as pl
from jax.experimental.pallas import tpu as pltpu


def _cdiv(a, b):
    return (a + b - 1) // b


def _round_up(a, b):
    return _cdiv(a, b) * b


def _tensorcores_per_chip():
    """TensorCores addressable by a single Mosaic kernel on this chip."""
    try:
        kind = jax.devices()[0].device_kind.lower()
    except Exception:
        return 1
    # single-TensorCore chips
    if ("lite" in kind or "v5e" in kind or "v6" in kind
            or "v2" in kind or "v3" in kind):
        return 1
    # megacore (v4 / v5p) and dual-TC (v7x) chips
    if "v7" in kind or "v4" in kind or "v5p" in kind or kind.strip() == "tpu v5":
        return 2
    return 1


# Contract over the row axis of both operands: X^T Y without materializing a
# transpose.
_NT_DIMS = (((0,), (0,)), ((), ()))


def _lda_stats_kernel(aug_ref, g_ref, g1_ref, *, f):
    """Accumulates two Gram matrices of the augmented row block [h | z | 1].

    Grid is (num_splits, steps): the leading axis is 'parallel' (sharded
    across TensorCores on multi-core chips), the trailing 'arbitrary' axis
    streams row blocks while the per-split (F+2, F+2) accumulators stay
    resident in VMEM.  Padded rows are all-zero, so they contribute nothing.
    """
    i = pl.program_id(1)

    @pl.when(i == 0)
    def _init():
        g_ref[...] = jnp.zeros_like(g_ref)
        g1_ref[...] = jnp.zeros_like(g1_ref)

    a = aug_ref[...]                       # (B, F+2) == [h - c | z | 1]
    zcol = a[:, f:f + 1]                   # (B, 1): 1 for group-1 rows, else 0
    az = a * zcol                          # group-1 rows of the block, 0 elsewhere

    # All first/second moments ride the MXU; no VPU axis-0 reductions.
    g_ref[...] += lax.dot_general(a, a, _NT_DIMS,
                                  preferred_element_type=jnp.float32)
    g1_ref[...] += lax.dot_general(az, a, _NT_DIMS,
                                   preferred_element_type=jnp.float32)


def lda_forward(h, z, *, sigma_reg=0.0, block_n=None, num_splits=None,
                target_tile_bytes=4 << 20):
    """Pallas implementation of LDA.forward (track_running_stats=False path).

    h: (N, F) observations-by-features; z: (N,) or (N, 1) protected label in
    {0, 1}.  Returns the normalized LDA direction w of shape (F,).
    """
    h = jnp.asarray(h)
    N, F = h.shape
    dtype = h.dtype
    z = jnp.asarray(z).reshape(N, 1).astype(dtype)

    if num_splits is None:
        num_splits = _tensorcores_per_chip()
    num_splits = max(1, int(num_splits))

    # Cheap constant pre-centering: exactly preserves sigma_k and
    # mean_1 - mean_0 (shift invariance) but removes the catastrophic
    # cancellation of the raw-second-moment formula when feature means are
    # large.  XLA fuses the subtraction into the concatenate below.
    c = jnp.mean(h[: min(N, 4096)].astype(jnp.float32), axis=0, keepdims=True)
    hc = (h.astype(jnp.float32) - c).astype(dtype)

    # Augmented operand [h - c | z | 1]: one lane-dense stream instead of a
    # separate, 128x lane-padded z stream; row sums / group-1 row sums / the
    # group-1 count all come out of its Gram matrix on the MXU.
    ones = jnp.ones((N, 1), dtype=dtype)
    aug = jnp.concatenate([hc, z, ones], axis=1)          # (N, F + 2)
    C = F + 2

    # ---- padding-aware VMEM budgeting (last dim -> 128 lanes, 2nd-to-last
    #      -> 8 sublanes), sized to fit v7x's 64 MiB/core with headroom ----
    itemsize = jnp.dtype(dtype).itemsize
    row_bytes = _round_up(C, 128) * itemsize               # padded bytes / row
    acc_bytes = 2 * _round_up(C, 8) * _round_up(C, 128) * 4  # two f32 accumulators
    acc_bytes *= 2                                          # assume double-buffered outputs

    budget = 40 << 20
    if block_n is None:
        block_n = target_tile_bytes // row_bytes
    max_rows = max(8, (budget - acc_bytes) // (2 * row_bytes))
    block_n = int(max(8, min(int(block_n), max_rows, 1 << 15)))
    block_n = _round_up(block_n, 8)
    # Shrink block_n to minimize zero-padding while keeping the step count.
    steps = max(1, _cdiv(N, num_splits * block_n))
    block_n = _round_up(_cdiv(N, num_splits * steps), 8)
    n_pad = num_splits * steps * block_n

    if n_pad != N:
        # Padded rows are all-zero: they contribute nothing to either Gram
        # (including the z^T z count); n0 uses the true N in the epilogue.
        aug = jnp.pad(aug, ((0, n_pad - N), (0, 0)))

    est = 2 * block_n * row_bytes + acc_bytes               # padded-byte estimate
    vmem_limit = int(min(max(est + (4 << 20), 16 << 20), 56 << 20))

    kernel = functools.partial(_lda_stats_kernel, f=F)
    g_p, g1_p = pl.pallas_call(
        kernel,
        out_shape=(
            jax.ShapeDtypeStruct((num_splits, C, C), jnp.float32),  # aug^T aug
            jax.ShapeDtypeStruct((num_splits, C, C), jnp.float32),  # (z*aug)^T aug
        ),
        grid_spec=pltpu.PrefetchScalarGridSpec(
            num_scalar_prefetch=0,
            grid=(num_splits, steps),
            in_specs=[
                pl.BlockSpec((block_n, C), lambda s, i: (s * steps + i, 0)),
            ],
            out_specs=[
                pl.BlockSpec((None, C, C), lambda s, i: (s, 0, 0)),
                pl.BlockSpec((None, C, C), lambda s, i: (s, 0, 0)),
            ]),
        compiler_params=pltpu.CompilerParams(
            dimension_semantics=("parallel", "arbitrary"),
            vmem_limit_bytes=vmem_limit),
    )(aug)

    # ---- tiny O(F^2)/O(F^3) epilogue in plain XLA: combine per-core
    #      partials, unpack the Gram blocks, pivoted solve, normalize ----
    g = jnp.sum(g_p, axis=0)                 # (C, C)
    g1 = jnp.sum(g1_p, axis=0)               # (C, C)

    s_all = g[:F, :F]                        # sum_i h_i h_i^T
    rs1 = g[:F, F]                           # sum_{z_i=1} h_i
    rs_all = g[:F, F + 1]                    # sum_i h_i
    n1 = g[F, F]                             # count(z == 1)  (= z^T z)
    s1 = g1[:F, :F]                          # sum_{z_i=1} h_i h_i^T

    n0 = jnp.float32(N) - n1                 # z assumed binary for real rows
    rs0 = rs_all - rs1
    mean0 = rs0 / n0                         # means of the *centered* data;
    mean1 = rs1 / n1                         # mean1 - mean0 is shift invariant
    s0 = s_all - s1
    # sigma_k = (H_k - mu_k)^T (H_k - mu_k) / (n_k - 1) = (S_k - n_k mu mu^T)/(n_k - 1)
    sigma0 = (s0 - n0 * jnp.outer(mean0, mean0)) / (n0 - 1.0)
    sigma1 = (s1 - n1 * jnp.outer(mean1, mean1)) / (n1 - 1.0)
    sigma = 0.5 * (sigma0 + sigma1)

    a_mat = (1.0 - sigma_reg) * sigma + sigma_reg * jnp.eye(F, dtype=jnp.float32)
    w_un = jnp.linalg.solve(a_mat, mean1 - mean0)
    return w_un / jnp.linalg.norm(w_un)


def protected_lda_projection(h, z, *, sigma_reg=0.0):
    """ProtectedLDAProjectionLayer.forward (projection branch), in plain XLA
    around the Pallas LDA kernel: returns (h projected out of w, proj loss)."""
    h = jnp.asarray(h)
    w = lda_forward(h, z, sigma_reg=sigma_reg)
    proj = h @ w                                    # (N,)
    projection_loss = jnp.sum(proj ** 2)
    ph = h - jnp.outer(proj, w)
    return ph, projection_loss


if __name__ == "__main__":
    # N deliberately NOT a multiple of the tile size to exercise tail padding.
    N, F = 250, 32
    key = jax.random.PRNGKey(0)
    kh, kz = jax.random.split(key)
    h = jax.random.normal(kh, (N, F), dtype=jnp.float32)
    z = (jax.random.uniform(kz, (N, 1)) < 0.5).astype(jnp.float32)

    w = jax.block_until_ready(lda_forward(h, z, sigma_reg=0.0))

    # pure-JAX reference (eager boolean masking; identical to LDA.forward with
    # track_running_stats=False)
    mask0 = z[:, 0] == 0.0
    mask1 = z[:, 0] == 1.0
    h0 = h[mask0]
    h1 = h[mask1]
    mean0 = h0.mean(axis=0)
    mean1 = h1.mean(axis=0)
    c0 = (h0 - mean0).T @ (h0 - mean0) / (h0.shape[0] - 1)
    c1 = (h1 - mean1).T @ (h1 - mean1) / (h1.shape[0] - 1)
    sigma = 0.5 * (c0 + c1)
    w_ref = jnp.linalg.solve(sigma, mean1 - mean0)
    w_ref = w_ref / jnp.linalg.norm(w_ref)

    if not jnp.allclose(w, w_ref, atol=1e-3, rtol=1e-3):
        raise AssertionError(f"mismatch:\n{w}\nvs\n{w_ref}")

    # ProtectedLDAProjectionLayer composition around the kernel (not asserted
    # against torch; it is trivial XLA on top of w).
    ph, proj_loss = protected_lda_projection(h, z)
    jax.block_until_ready((ph, proj_loss))

    print("KERNEL_OK")
</pallas_src>

<mosaic_0001>
module attributes {stable_mosaic.version = 11 : i64} {
  func.func @_lda_stats_kernel(%arg0: i32, %arg1: i32, %arg2: memref<256x34xf32, #tpu.memory_space<vmem>>, %arg3: memref<1x34x34xf32, #tpu.memory_space<vmem>>, %arg4: memref<1x34x34xf32, #tpu.memory_space<vmem>>) attributes {dimension_semantics = [#tpu.dimension_semantics<parallel>, #tpu.dimension_semantics<arbitrary>], iteration_bounds = array<i64: 1, 1>, scalar_prefetch = 0 : i64, scratch_operands = 0 : i64, tpu.core_type = #tpu.core_type<tc>, window_params = [{transform_indices = @transform_0, window_bounds = array<i64: 256, 34>}, {transform_indices = @transform_1, window_bounds = array<i64: 1, 34, 34>}, {transform_indices = @transform_2, window_bounds = array<i64: 1, 34, 34>}]} {
    %c0_i32 = arith.constant 0 : i32
    %0 = arith.cmpi eq, %arg1, %c0_i32 : i32
    %1 = arith.extui %0 : i1 to i32
    %c0_i32_0 = arith.constant 0 : i32
    %2 = arith.cmpi ne, %1, %c0_i32_0 : i32
    scf.if %2 {
      %cst_15 = arith.constant 0.000000e+00 : f32
      %21 = vector.broadcast %cst_15 : f32 to vector<34x34xf32>
      %c0_16 = arith.constant 0 : index
      %c0_17 = arith.constant 0 : index
      %c0_18 = arith.constant 0 : index
      %22 = vector.load %arg3[%c0_16, %c0_17, %c0_18] : memref<1x34x34xf32, #tpu.memory_space<vmem>>, vector<1x34x34xf32>
      %23 = vector.shape_cast %22 : vector<1x34x34xf32> to vector<34x34xf32>
      %24 = vector.shape_cast %21 : vector<34x34xf32> to vector<1x34x34xf32>
      tpu.vector_store %arg3[%c0_16, %c0_17, %c0_18], %24 {strides = array<i32>} : memref<1x34x34xf32, #tpu.memory_space<vmem>>, vector<1x34x34xf32>,
      %cst_19 = arith.constant 0.000000e+00 : f32
      %25 = vector.broadcast %cst_19 : f32 to vector<34x34xf32>
      %c0_20 = arith.constant 0 : index
      %c0_21 = arith.constant 0 : index
      %c0_22 = arith.constant 0 : index
      %26 = vector.load %arg4[%c0_20, %c0_21, %c0_22] : memref<1x34x34xf32, #tpu.memory_space<vmem>>, vector<1x34x34xf32>
      %27 = vector.shape_cast %26 : vector<1x34x34xf32> to vector<34x34xf32>
      %28 = vector.shape_cast %25 : vector<34x34xf32> to vector<1x34x34xf32>
      tpu.vector_store %arg4[%c0_20, %c0_21, %c0_22], %28 {strides = array<i32>} : memref<1x34x34xf32, #tpu.memory_space<vmem>>, vector<1x34x34xf32>,
    } else {
    }
    %c0 = arith.constant 0 : index
    %c0_1 = arith.constant 0 : index
    %3 = vector.load %arg2[%c0, %c0_1] : memref<256x34xf32, #tpu.memory_space<vmem>>, vector<256x34xf32>
    %4 = vector.extract_strided_slice %3 {offsets = [0, 32], sizes = [256, 1], strides = [1, 1]} : vector<256x34xf32> to vector<256x1xf32>
    %5 = vector.broadcast %4 : vector<256x1xf32> to vector<256x34xf32>
    %6 = arith.mulf %3, %5 : vector<256x34xf32>
    %c0_2 = arith.constant 0 : index
    %c0_3 = arith.constant 0 : index
    %c0_4 = arith.constant 0 : index
    %7 = vector.load %arg3[%c0_2, %c0_3, %c0_4] : memref<1x34x34xf32, #tpu.memory_space<vmem>>, vector<1x34x34xf32>
    %8 = vector.shape_cast %7 : vector<1x34x34xf32> to vector<34x34xf32>
    %cst = arith.constant dense<0.000000e+00> : vector<34x34xf32>
    %9 = tpu.matmul %3, %3, %cst {dimension_numbers = #tpu.dot_dimension_numbers<[0], [0], [1], [1], [0, 1, 1, 1], [], []>} : vector<256x34xf32>, vector<256x34xf32>, vector<34x34xf32> -> vector<34x34xf32>
    %10 = arith.addf %8, %9 : vector<34x34xf32>
    %c0_5 = arith.constant 0 : index
    %c0_6 = arith.constant 0 : index
    %c0_7 = arith.constant 0 : index
    %11 = vector.load %arg3[%c0_5, %c0_6, %c0_7] : memref<1x34x34xf32, #tpu.memory_space<vmem>>, vector<1x34x34xf32>
    %12 = vector.shape_cast %11 : vector<1x34x34xf32> to vector<34x34xf32>
    %13 = vector.shape_cast %10 : vector<34x34xf32> to vector<1x34x34xf32>
    tpu.vector_store %arg3[%c0_5, %c0_6, %c0_7], %13 {strides = array<i32>} : memref<1x34x34xf32, #tpu.memory_space<vmem>>, vector<1x34x34xf32>,
    %c0_8 = arith.constant 0 : index
    %c0_9 = arith.constant 0 : index
    %c0_10 = arith.constant 0 : index
    %14 = vector.load %arg4[%c0_8, %c0_9, %c0_10] : memref<1x34x34xf32, #tpu.memory_space<vmem>>, vector<1x34x34xf32>
    %15 = vector.shape_cast %14 : vector<1x34x34xf32> to vector<34x34xf32>
    %cst_11 = arith.constant dense<0.000000e+00> : vector<34x34xf32>
    %16 = tpu.matmul %6, %3, %cst_11 {dimension_numbers = #tpu.dot_dimension_numbers<[0], [0], [1], [1], [0, 1, 1, 1], [], []>} : vector<256x34xf32>, vector<256x34xf32>, vector<34x34xf32> -> vector<34x34xf32>
    %17 = arith.addf %15, %16 : vector<34x34xf32>
    %c0_12 = arith.constant 0 : index
    %c0_13 = arith.constant 0 : index
    %c0_14 = arith.constant 0 : index
    %18 = vector.load %arg4[%c0_12, %c0_13, %c0_14] : memref<1x34x34xf32, #tpu.memory_space<vmem>>, vector<1x34x34xf32>
    %19 = vector.shape_cast %18 : vector<1x34x34xf32> to vector<34x34xf32>
    %20 = vector.shape_cast %17 : vector<34x34xf32> to vector<1x34x34xf32>
    tpu.vector_store %arg4[%c0_12, %c0_13, %c0_14], %20 {strides = array<i32>} : memref<1x34x34xf32, #tpu.memory_space<vmem>>, vector<1x34x34xf32>,
    return
  }
  func.func @transform_0(%arg0: i32, %arg1: i32) -> (i32, i32) {
    %c1_i32 = arith.constant 1 : i32
    %0 = arith.muli %arg0, %c1_i32 : i32
    %1 = arith.addi %0, %arg1 : i32
    %c0_i32 = arith.constant 0 : i32
    %c0_i32_0 = arith.constant 0 : i32
    return %1, %c0_i32 : i32, i32
  }
  func.func @transform_1(%arg0: i32, %arg1: i32) -> (i32, i32, i32) {
    %c0_i32 = arith.constant 0 : i32
    %c0_i32_0 = arith.constant 0 : i32
    %c0_i32_1 = arith.constant 0 : i32
    return %arg0, %c0_i32, %c0_i32_0 : i32, i32, i32
  }
  func.func @transform_2(%arg0: i32, %arg1: i32) -> (i32, i32, i32) {
    %c0_i32 = arith.constant 0 : i32
    %c0_i32_0 = arith.constant 0 : i32
    %c0_i32_1 = arith.constant 0 : i32
    return %arg0, %c0_i32, %c0_i32_0 : i32, i32, i32
  }
}

</mosaic_0001>

<llo_original>
// kernel: tpu_custom_call.1
$region0: #{tpu_custom_call.1}
  #allocation0 [shape = 'u32[]', space=smem, size = 0x4, offset = 0x4, fixed_abs, tag = 'smem constant byte address 0x4 - core index']
  #allocation1 [shape = 'u32[144,128]{1,0:T(1,128)}', space=vmem, size = 0x12000, scoped, tag = 'internal scratch']
  %s0 = inlined_call_operand.vmem [shape: f32[256,34], index: 0, kind: input, shape index: {}]
  %s1 = inlined_call_operand.vmem [shape: f32[1,34,34], index: 1, kind: output, shape index: {0}]
  %s2 = inlined_call_operand.vmem [shape: f32[1,34,34], index: 2, kind: output, shape index: {1}]
  %3 = xla_tuple %s1, %s2
  %s4 = sld [smem:[#allocation0]]
  $region26: #{tpu_custom_call.1} parent=0
    _
  %s6 = ssub.s32 1, %s4
  %s7 = scalar_select 0, %s6, %s4
  // Predicated region
  $region2: #{tpu_custom_call.1} parent=0 // pred_check
    _
  $region3: #{tpu_custom_call.1} parent=0 // pred_check_branch
    %9 = sbr.rel (0) target = $region5
  $region4: #{tpu_custom_call.1} parent=0 // pred_region
    %s10 = sadd.s32 0, 0
    %s11 = smul.u32 32, %s10
    %p12 = scmp.lt.s32.totalorder %s11, 31
    %s13 = scalar_select %p12, %s11, 31
    %s14 = smul.addr %s13, 8
    %s15 = scalar_lea.vmem %s0, %s14
    %s16 = sadd.s32 0, 0
    %s17 = smul.u32 32, %s16
  $region5: #{tpu_custom_call.1} parent=0 // pred_fallthru
    _
  %s18 = sadd.s32 0, 0
  %s19 = smul.u32 32, %s18
  %p20 = scmp.lt.s32.totalorder %s19, 31
  %s21 = scalar_select %p20, %s19, 31
  %s22 = smul.addr %s21, 8
  %s23 = scalar_lea.vmem %s0, %s22
  %s24 = sadd.s32 0, 0
  %s25 = smul.u32 32, %s24
  %p26 = scmp.lt.s32.totalorder %s25, 31
  %s27 = scalar_select %p26, %s25, 31
  %s28 = smul.addr %s27, 8
  %s29 = scalar_lea.vmem %s0, %s28
  %s30 = sadd.s32 0, 0
  %s31 = smul.u32 32, %s30
  %p32 = scmp.eq.s32.totalorder 0, 0
  // Predicated region
  $region6: #{tpu_custom_call.1} parent=0 // pred_check
    %p33 = pneg %p32
  $region7: #{tpu_custom_call.1} parent=0 // pred_check_branch
    %35 = sbr.rel (%p33) target = $region9
  $region8: #{tpu_custom_call.1} parent=0 // pred_region
    %vm36 = vcmask 277504
    %37 = vst.msk [vmem:[%s1] sm:$0xff] %vm36, 0.0
    %38 = vst.msk [vmem:[%s1 + $0x8] sm:$0xff] %vm36, 0.0
    %39 = vst.msk [vmem:[%s1 + $0x10] sm:$0xff] %vm36, 0.0
    %40 = vst.msk [vmem:[%s1 + $0x18] sm:$0xff] %vm36, 0.0
    %vm41 = vcmask 271360
    %42 = vst.msk [vmem:[%s1 + $0x20] sm:$0x3] %vm41, 0.0
    %43 = vst.msk [vmem:[%s2] sm:$0xff] %vm36, 0.0
    %44 = vst.msk [vmem:[%s2 + $0x8] sm:$0xff] %vm36, 0.0
    %45 = vst.msk [vmem:[%s2 + $0x10] sm:$0xff] %vm36, 0.0
    %46 = vst.msk [vmem:[%s2 + $0x18] sm:$0xff] %vm36, 0.0
    %47 = vst.msk [vmem:[%s2 + $0x20] sm:$0x3] %vm41, 0.0
  $region9: #{tpu_custom_call.1} parent=0 // pred_fallthru
    _
  %v48 = vld [vmem:[%s29] sm:$0xff]
  %v49 = vld [vmem:[%s29 + $0x8] sm:$0xff]
  %v50 = vld [vmem:[%s29 + $0x10] sm:$0xff]
  %v51 = vld [vmem:[%s29 + $0x18] sm:$0xff]
  %v52 = vld [vmem:[%s29 + $0x20] sm:$0xff]
  %v53 = vld [vmem:[%s29 + $0x28] sm:$0xff]
  %v54 = vld [vmem:[%s29 + $0x30] sm:$0xff]
  %v55 = vld [vmem:[%s29 + $0x38] sm:$0xff]
  %v56 = vld [vmem:[%s29 + $0x40] sm:$0xff]
  %v57 = vld [vmem:[%s29 + $0x48] sm:$0xff]
  %v58 = vld [vmem:[%s29 + $0x50] sm:$0xff]
  %v59 = vld [vmem:[%s29 + $0x58] sm:$0xff]
  %v60 = vld [vmem:[%s29 + $0x60] sm:$0xff]
  %v61 = vld [vmem:[%s29 + $0x68] sm:$0xff]
  %v62 = vld [vmem:[%s29 + $0x70] sm:$0xff]
  %v63 = vld [vmem:[%s29 + $0x78] sm:$0xff]
  %v64 = vld [vmem:[%s29 + $0x80] sm:$0xff]
  %v65 = vld [vmem:[%s29 + $0x88] sm:$0xff]
  %v66 = vld [vmem:[%s29 + $0x90] sm:$0xff]
  %v67 = vld [vmem:[%s29 + $0x98] sm:$0xff]
  %v68 = vld [vmem:[%s29 + $0xa0] sm:$0xff]
  %v69 = vld [vmem:[%s29 + $0xa8] sm:$0xff]
  %v70 = vld [vmem:[%s29 + $0xb0] sm:$0xff]
  %v71 = vld [vmem:[%s29 + $0xb8] sm:$0xff]
  %v72 = vld [vmem:[%s29 + $0xc0] sm:$0xff]
  %v73 = vld [vmem:[%s29 + $0xc8] sm:$0xff]
  %v74 = vld [vmem:[%s29 + $0xd0] sm:$0xff]
  %v75 = vld [vmem:[%s29 + $0xd8] sm:$0xff]
  %v76 = vld [vmem:[%s29 + $0xe0] sm:$0xff]
  %v77 = vld [vmem:[%s29 + $0xe8] sm:$0xff]
  %v78 = vld [vmem:[%s29 + $0xf0] sm:$0xff]
  %v79 = vld [vmem:[%s29 + $0xf8] sm:$0xff]
  %81 = vset.pattern.permute.xlu0 32
  %82 = vperm.xlu0 %81, %v48
  %v83 = vpop.permute.xlu0 %82
  %86 = vset.pattern.permute.xlu0 32
  %87 = vperm.xlu0 %86, %v49
  %v88 = vpop.permute.xlu0 %87
  %91 = vset.pattern.permute.xlu0 32
  %92 = vperm.xlu0 %91, %v50
  %v93 = vpop.permute.xlu0 %92
  %96 = vset.pattern.permute.xlu0 32
  %97 = vperm.xlu0 %96, %v51
  %v98 = vpop.permute.xlu0 %97
  %101 = vset.pattern.permute.xlu0 32
  %102 = vperm.xlu0 %101, %v52
  %v103 = vpop.permute.xlu0 %102
  %106 = vset.pattern.permute.xlu0 32
  %107 = vperm.xlu0 %106, %v53
  %v108 = vpop.permute.xlu0 %107
  %111 = vset.pattern.permute.xlu0 32
  %112 = vperm.xlu0 %111, %v54
  %v113 = vpop.permute.xlu0 %112
  %116 = vset.pattern.permute.xlu0 32
  %117 = vperm.xlu0 %116, %v55
  %v118 = vpop.permute.xlu0 %117
  %121 = vset.pattern.permute.xlu0 32
  %122 = vperm.xlu0 %121, %v56
  %v123 = vpop.permute.xlu0 %122
  %126 = vset.pattern.permute.xlu0 32
  %127 = vperm.xlu0 %126, %v57
  %v128 = vpop.permute.xlu0 %127
  %131 = vset.pattern.permute.xlu0 32
  %132 = vperm.xlu0 %131, %v58
  %v133 = vpop.permute.xlu0 %132
  %136 = vset.pattern.permute.xlu0 32
  %137 = vperm.xlu0 %136, %v59
  %v138 = vpop.permute.xlu0 %137
  %141 = vset.pattern.permute.xlu0 32
  %142 = vperm.xlu0 %141, %v60
  %v143 = vpop.permute.xlu0 %142
  %146 = vset.pattern.permute.xlu0 32
  %147 = vperm.xlu0 %146, %v61
  %v148 = vpop.permute.xlu0 %147
  %151 = vset.pattern.permute.xlu0 32
  %152 = vperm.xlu0 %151, %v62
  %v153 = vpop.permute.xlu0 %152
  %156 = vset.pattern.permute.xlu0 32
  %157 = vperm.xlu0 %156, %v63
  %v158 = vpop.permute.xlu0 %157
  %161 = vset.pattern.permute.xlu0 32
  %162 = vperm.xlu0 %161, %v64
  %v163 = vpop.permute.xlu0 %162
  %166 = vset.pattern.permute.xlu0 32
  %167 = vperm.xlu0 %166, %v65
  %v168 = vpop.permute.xlu0 %167
  %171 = vset.pattern.permute.xlu0 32
  %172 = vperm.xlu0 %171, %v66
  %v173 = vpop.permute.xlu0 %172
  %176 = vset.pattern.permute.xlu0 32
  %177 = vperm.xlu0 %176, %v67
  %v178 = vpop.permute.xlu0 %177
  %181 = vset.pattern.permute.xlu0 32
  %182 = vperm.xlu0 %181, %v68
  %v183 = vpop.permute.xlu0 %182
  %186 = vset.pattern.permute.xlu0 32
  %187 = vperm.xlu0 %186, %v69
  %v188 = vpop.permute.xlu0 %187
  %191 = vset.pattern.permute.xlu0 32
  %192 = vperm.xlu0 %191, %v70
  %v193 = vpop.permute.xlu0 %192
  %196 = vset.pattern.permute.xlu0 32
  %197 = vperm.xlu0 %196, %v71
  %v198 = vpop.permute.xlu0 %197
  %201 = vset.pattern.permute.xlu0 32
  %202 = vperm.xlu0 %201, %v72
  %v203 = vpop.permute.xlu0 %202
  %206 = vset.pattern.permute.xlu0 32
  %207 = vperm.xlu0 %206, %v73
  %v208 = vpop.permute.xlu0 %207
  %211 = vset.pattern.permute.xlu0 32
  %212 = vperm.xlu0 %211, %v74
  %v213 = vpop.permute.xlu0 %212
  %216 = vset.pattern.permute.xlu0 32
  %217 = vperm.xlu0 %216, %v75
  %v218 = vpop.permute.xlu0 %217
  %221 = vset.pattern.permute.xlu0 32
  %222 = vperm.xlu0 %221, %v76
  %v223 = vpop.permute.xlu0 %222
  %226 = vset.pattern.permute.xlu0 32
  %227 = vperm.xlu0 %226, %v77
  %v228 = vpop.permute.xlu0 %227
  %231 = vset.pattern.permute.xlu0 32
  %232 = vperm.xlu0 %231, %v78
  %v233 = vpop.permute.xlu0 %232
  %236 = vset.pattern.permute.xlu0 32
  %237 = vperm.xlu0 %236, %v79
  %v238 = vpop.permute.xlu0 %237
  %v240 = vmul.f32 %v48, %v83
  %v241 = vmul.f32 %v49, %v88
  %v242 = vmul.f32 %v50, %v93
  %v243 = vmul.f32 %v51, %v98
  %v244 = vmul.f32 %v52, %v103
  %v245 = vmul.f32 %v53, %v108
  %v246 = vmul.f32 %v54, %v113
  %v247 = vmul.f32 %v55, %v118
  %v248 = vmul.f32 %v56, %v123
  %v249 = vmul.f32 %v57, %v128
  %v250 = vmul.f32 %v58, %v133
  %v251 = vmul.f32 %v59, %v138
  %v252 = vmul.f32 %v60, %v143
  %v253 = vmul.f32 %v61, %v148
  %v254 = vmul.f32 %v62, %v153
  %v255 = vmul.f32 %v63, %v158
  %v256 = vmul.f32 %v64, %v163
  %v257 = vmul.f32 %v65, %v168
  %v258 = vmul.f32 %v66, %v173
  %v259 = vmul.f32 %v67, %v178
  %v260 = vmul.f32 %v68, %v183
  %v261 = vmul.f32 %v69, %v188
  %v262 = vmul.f32 %v70, %v193
  %v263 = vmul.f32 %v71, %v198
  %v264 = vmul.f32 %v72, %v203
  %v265 = vmul.f32 %v73, %v208
  %v266 = vmul.f32 %v74, %v213
  %v267 = vmul.f32 %v75, %v218
  %v268 = vmul.f32 %v76, %v223
  %v269 = vmul.f32 %v77, %v228
  %v270 = vmul.f32 %v78, %v233
  %v271 = vmul.f32 %v79, %v238
  %v272 = vld [vmem:[%s1] sm:$0xff]
  %v273 = vld [vmem:[%s1 + $0x8] sm:$0xff]
  %v274 = vld [vmem:[%s1 + $0x10] sm:$0xff]
  %v275 = vld [vmem:[%s1 + $0x18] sm:$0xff]
  %v276 = vld [vmem:[%s1 + $0x20] sm:$0x3]
  %277 = vxpose.xlu0.b32.start [1/16] %v48, 128
  %278 = vxpose.xlu0.b32.cont [2/16] %v49, 128
  %279 = vxpose.xlu0.b32.cont [3/16] %v50, 128
  %280 = vxpose.xlu0.b32.cont [4/16] %v51, 128
  %281 = vxpose.xlu0.b32.cont [5/16] %v52, 128
  %282 = vxpose.xlu0.b32.cont [6/16] %v53, 128
  %283 = vxpose.xlu0.b32.cont [7/16] %v54, 128
  %284 = vxpose.xlu0.b32.cont [8/16] %v55, 128
  %285 = vxpose.xlu0.b32.cont [9/16] %v56, 128
  %286 = vxpose.xlu0.b32.cont [10/16] %v57, 128
  %287 = vxpose.xlu0.b32.cont [11/16] %v58, 128
  %288 = vxpose.xlu0.b32.cont [12/16] %v59, 128
  %289 = vxpose.xlu0.b32.cont [13/16] %v60, 128
  %290 = vxpose.xlu0.b32.cont [14/16] %v61, 128
  %291 = vxpose.xlu0.b32.cont [15/16] %v62, 128
  %292 = vxpose.xlu0.b32.end [16/16] %v63, 128
  %v293 = vpop.trf.xlu0
  %v294 = vpop.trf.xlu0
  %v295 = vpop.trf.xlu0
  %v296 = vpop.trf.xlu0
  %v297 = vpop.trf.xlu0
  %v298 = vpop.trf.xlu0
  %v299 = vpop.trf.xlu0
  %v300 = vpop.trf.xlu0
  %v301 = vpop.trf.xlu0
  %v302 = vpop.trf.xlu0
  %v303 = vpop.trf.xlu0
  %v304 = vpop.trf.xlu0
  %v305 = vpop.trf.xlu0
  %v306 = vpop.trf.xlu0
  %v307 = vpop.trf.xlu0
  %v308 = vpop.trf.xlu0
  %309 = vxpose.xlu0.b32.start [1/16] %v64, 128
  %310 = vxpose.xlu0.b32.cont [2/16] %v65, 128
  %311 = vxpose.xlu0.b32.cont [3/16] %v66, 128
  %312 = vxpose.xlu0.b32.cont [4/16] %v67, 128
  %313 = vxpose.xlu0.b32.cont [5/16] %v68, 128
  %314 = vxpose.xlu0.b32.cont [6/16] %v69, 128
  %315 = vxpose.xlu0.b32.cont [7/16] %v70, 128
  %316 = vxpose.xlu0.b32.cont [8/16] %v71, 128
  %317 = vxpose.xlu0.b32.cont [9/16] %v72, 128
  %318 = vxpose.xlu0.b32.cont [10/16] %v73, 128
  %319 = vxpose.xlu0.b32.cont [11/16] %v74, 128
  %320 = vxpose.xlu0.b32.cont [12/16] %v75, 128
  %321 = vxpose.xlu0.b32.cont [13/16] %v76, 128
  %322 = vxpose.xlu0.b32.cont [14/16] %v77, 128
  %323 = vxpose.xlu0.b32.cont [15/16] %v78, 128
  %324 = vxpose.xlu0.b32.end [16/16] %v79, 128
  %v325 = vpop.trf.xlu0
  %v326 = vpop.trf.xlu0
  %v327 = vpop.trf.xlu0
  %v328 = vpop.trf.xlu0
  %v329 = vpop.trf.xlu0
  %v330 = vpop.trf.xlu0
  %v331 = vpop.trf.xlu0
  %v332 = vpop.trf.xlu0
  %v333 = vpop.trf.xlu0
  %v334 = vpop.trf.xlu0
  %v335 = vpop.trf.xlu0
  %v336 = vpop.trf.xlu0
  %v337 = vpop.trf.xlu0
  %v338 = vpop.trf.xlu0
  %v339 = vpop.trf.xlu0
  %v340 = vpop.trf.xlu0
  %341 = vmatprep.subr.mxu0 0.0
  %342 = vmatpush1.msra.mxu0 %v48
  %343 = vmatprep.subr.mxu0 0.0
  %344 = vmatpush1.msra.mxu0 %v49
  %345 = vmatprep.subr.mxu0 0.0
  %346 = vmatpush1.msra.mxu0 %v50
  %347 = vmatprep.subr.mxu0 0.0
  %348 = vmatpush1.msra.mxu0 %v51
  %349 = vmatprep.subr.mxu0 0.0
  %350 = vmatpush1.msra.mxu0 %v52
  %351 = vmatprep.subr.mxu0 0.0
  %352 = vmatpush1.msra.mxu0 %v53
  %353 = vmatprep.subr.mxu0 0.0
  %354 = vmatpush1.msra.mxu0 %v54
  %355 = vmatprep.subr.mxu0 0.0
  %356 = vmatpush1.msra.mxu0 %v55
  %357 = vmatprep.subr.mxu0 0.0
  %358 = vmatpush1.msra.mxu0 %v56
  %359 = vmatprep.subr.mxu0 0.0
  %360 = vmatpush1.msra.mxu0 %v57
  %361 = vmatprep.subr.mxu0 0.0
  %362 = vmatpush1.msra.mxu0 %v58
  %363 = vmatprep.subr.mxu0 0.0
  %364 = vmatpush1.msra.mxu0 %v59
  %365 = vmatprep.subr.mxu0 0.0
  %366 = vmatpush1.msra.mxu0 %v60
  %367 = vmatprep.subr.mxu0 0.0
  %368 = vmatpush1.msra.mxu0 %v61
  %369 = vmatprep.subr.mxu0 0.0
  %370 = vmatpush1.msra.mxu0 %v62
  %371 = vmatprep.subr.mxu0 0.0
  %372 = vmatpush1.msra.mxu0 %v63
  %373 = vmatprep.subr.mxu0 0.0
  %374 = vmatpush1.msra.mxu0 %v64
  %375 = vmatprep.subr.mxu0 0.0
  %376 = vmatpush1.msra.mxu0 %v65
  %377 = vmatprep.subr.mxu0 0.0
  %378 = vmatpush1.msra.mxu0 %v66
  %379 = vmatprep.subr.mxu0 0.0
  %380 = vmatpush1.msra.mxu0 %v67
  %381 = vmatprep.subr.mxu0 0.0
  %382 = vmatpush1.msra.mxu0 %v68
  %383 = vmatprep.subr.mxu0 0.0
  %384 = vmatpush1.msra.mxu0 %v69
  %385 = vmatprep.subr.mxu0 0.0
  %386 = vmatpush1.msra.mxu0 %v70
  %387 = vmatprep.subr.mxu0 0.0
  %388 = vmatpush1.msra.mxu0 %v71
  %389 = vmatprep.subr.mxu0 0.0
  %390 = vmatpush1.msra.mxu0 %v72
  %391 = vmatprep.subr.mxu0 0.0
  %392 = vmatpush1.msra.mxu0 %v73
  %393 = vmatprep.subr.mxu0 0.0
  %394 = vmatpush1.msra.mxu0 %v74
  %395 = vmatprep.subr.mxu0 0.0
  %396 = vmatpush1.msra.mxu0 %v75
  %397 = vmatprep.subr.mxu0 0.0
  %398 = vmatpush1.msra.mxu0 %v76
  %399 = vmatprep.subr.mxu0 0.0
  %400 = vmatpush1.msra.mxu0 %v77
  %401 = vmatprep.subr.mxu0 0.0
  %402 = vmatpush1.msra.mxu0 %v78
  %403 = vmatprep.subr.mxu0 0.0
  %404 = vmatpush1.msra.mxu0 %v79
  %405 = vmatprep.mubr.f32.mxu0 %v325
  %406 = vmatmul.mubr.f32.gmra.mrb[0].mxu0 %v293
  %v407 = vpop.f32.mrb[0].mxu0
  %v408 = vadd.f32 0.0, %v407
  %v409 = vpop.f32.mrb[0].mxu0
  %410 = vmatprep.mubr.f32.mxu0 %v326
  %411 = vmatmul.mubr.f32.gmra.mrb[0].mxu0 %v294
  %v412 = vpop.f32.mrb[0].mxu0
  %v413 = vadd.f32 0.0, %v412
  %v414 = vpop.f32.mrb[0].mxu0
  %415 = vmatprep.mubr.f32.mxu0 %v327
  %416 = vmatmul.mubr.f32.gmra.mrb[0].mxu0 %v295
  %v417 = vpop.f32.mrb[0].mxu0
  %v418 = vadd.f32 0.0, %v417
  %v419 = vpop.f32.mrb[0].mxu0
  %420 = vmatprep.mubr.f32.mxu0 %v328
  %421 = vmatmul.mubr.f32.gmra.mrb[0].mxu0 %v296
  %v422 = vpop.f32.mrb[0].mxu0
  %v423 = vadd.f32 0.0, %v422
  %v424 = vpop.f32.mrb[0].mxu0
  %425 = vmatprep.mubr.f32.mxu0 %v329
  %426 = vmatmul.mubr.f32.gmra.mrb[0].mxu0 %v297
  %v427 = vpop.f32.mrb[0].mxu0
  %v428 = vadd.f32 0.0, %v427
  %v429 = vpop.f32.mrb[0].mxu0
  %430 = vdwg.mxu0
  %v431 = vadd.f32 %v272, %v408
  %v432 = vadd.f32 %v273, %v413
  %v433 = vadd.f32 %v274, %v418
  %v434 = vadd.f32 %v275, %v423
  %v435 = vadd.f32 %v276, %v428
  %vm436 = vcmask 277504
  %437 = vst.msk [vmem:[%s1] sm:$0xff] %vm436, %v431
  %438 = vst.msk [vmem:[%s1 + $0x8] sm:$0xff] %vm436, %v432
  %439 = vst.msk [vmem:[%s1 + $0x10] sm:$0xff] %vm436, %v433
  %440 = vst.msk [vmem:[%s1 + $0x18] sm:$0xff] %vm436, %v434
  %vm441 = vcmask 271360
  %442 = vst.msk [vmem:[%s1 + $0x20] sm:$0x3] %vm441, %v435
  %v443 = vld [vmem:[%s2] sm:$0xff]
  %v444 = vld [vmem:[%s2 + $0x8] sm:$0xff]
  %v445 = vld [vmem:[%s2 + $0x10] sm:$0xff]
  %v446 = vld [vmem:[%s2 + $0x18] sm:$0xff]
  %v447 = vld [vmem:[%s2 + $0x20] sm:$0x3]
  %448 = vxpose.xlu0.b32.start [1/16] %v240, 128
  %449 = vxpose.xlu0.b32.cont [2/16] %v241, 128
  %450 = vxpose.xlu0.b32.cont [3/16] %v242, 128
  %451 = vxpose.xlu0.b32.cont [4/16] %v243, 128
  %452 = vxpose.xlu0.b32.cont [5/16] %v244, 128
  %453 = vxpose.xlu0.b32.cont [6/16] %v245, 128
  %454 = vxpose.xlu0.b32.cont [7/16] %v246, 128
  %455 = vxpose.xlu0.b32.cont [8/16] %v247, 128
  %456 = vxpose.xlu0.b32.cont [9/16] %v248, 128
  %457 = vxpose.xlu0.b32.cont [10/16] %v249, 128
  %458 = vxpose.xlu0.b32.cont [11/16] %v250, 128
  %459 = vxpose.xlu0.b32.cont [12/16] %v251, 128
  %460 = vxpose.xlu0.b32.cont [13/16] %v252, 128
  %461 = vxpose.xlu0.b32.cont [14/16] %v253, 128
  %462 = vxpose.xlu0.b32.cont [15/16] %v254, 128
  %463 = vxpose.xlu0.b32.end [16/16] %v255, 128
  %v464 = vpop.trf.xlu0
  %v465 = vpop.trf.xlu0
  %v466 = vpop.trf.xlu0
  %v467 = vpop.trf.xlu0
  %v468 = vpop.trf.xlu0
  %v469 = vpop.trf.xlu0
  %v470 = vpop.trf.xlu0
  %v471 = vpop.trf.xlu0
  %v472 = vpop.trf.xlu0
  %v473 = vpop.trf.xlu0
  %v474 = vpop.trf.xlu0
  %v475 = vpop.trf.xlu0
  %v476 = vpop.trf.xlu0
  %v477 = vpop.trf.xlu0
  %v478 = vpop.trf.xlu0
  %v479 = vpop.trf.xlu0
  %480 = vxpose.xlu0.b32.start [1/16] %v256, 128
  %481 = vxpose.xlu0.b32.cont [2/16] %v257, 128
  %482 = vxpose.xlu0.b32.cont [3/16] %v258, 128
  %483 = vxpose.xlu0.b32.cont [4/16] %v259, 128
  %484 = vxpose.xlu0.b32.cont [5/16] %v260, 128
  %485 = vxpose.xlu0.b32.cont [6/16] %v261, 128
  %486 = vxpose.xlu0.b32.cont [7/16] %v262, 128
  %487 = vxpose.xlu0.b32.cont [8/16] %v263, 128
  %488 = vxpose.xlu0.b32.cont [9/16] %v264, 128
  %489 = vxpose.xlu0.b32.cont [10/16] %v265, 128
  %490 = vxpose.xlu0.b32.cont [11/16] %v266, 128
  %491 = vxpose.xlu0.b32.cont [12/16] %v267, 128
  %492 = vxpose.xlu0.b32.cont [13/16] %v268, 128
  %493 = vxpose.xlu0.b32.cont [14/16] %v269, 128
  %494 = vxpose.xlu0.b32.cont [15/16] %v270, 128
  %495 = vxpose.xlu0.b32.end [16/16] %v271, 128
  %v496 = vpop.trf.xlu0
  %v497 = vpop.trf.xlu0
  %v498 = vpop.trf.xlu0
  %v499 = vpop.trf.xlu0
  %v500 = vpop.trf.xlu0
  %v501 = vpop.trf.xlu0
  %v502 = vpop.trf.xlu0
  %v503 = vpop.trf.xlu0
  %v504 = vpop.trf.xlu0
  %v505 = vpop.trf.xlu0
  %v506 = vpop.trf.xlu0
  %v507 = vpop.trf.xlu0
  %v508 = vpop.trf.xlu0
  %v509 = vpop.trf.xlu0
  %v510 = vpop.trf.xlu0
  %v511 = vpop.trf.xlu0
  %512 = vmatprep.subr.mxu0 0.0
  %513 = vmatpush1.msra.mxu0 %v48
  %514 = vmatprep.subr.mxu0 0.0
  %515 = vmatpush1.msra.mxu0 %v49
  %516 = vmatprep.subr.mxu0 0.0
  %517 = vmatpush1.msra.mxu0 %v50
  %518 = vmatprep.subr.mxu0 0.0
  %519 = vmatpush1.msra.mxu0 %v51
  %520 = vmatprep.subr.mxu0 0.0
  %521 = vmatpush1.msra.mxu0 %v52
  %522 = vmatprep.subr.mxu0 0.0
  %523 = vmatpush1.msra.mxu0 %v53
  %524 = vmatprep.subr.mxu0 0.0
  %525 = vmatpush1.msra.mxu0 %v54
  %526 = vmatprep.subr.mxu0 0.0
  %527 = vmatpush1.msra.mxu0 %v55
  %528 = vmatprep.subr.mxu0 0.0
  %529 = vmatpush1.msra.mxu0 %v56
  %530 = vmatprep.subr.mxu0 0.0
  %531 = vmatpush1.msra.mxu0 %v57
  %532 = vmatprep.subr.mxu0 0.0
  %533 = vmatpush1.msra.mxu0 %v58
  %534 = vmatprep.subr.mxu0 0.0
  %535 = vmatpush1.msra.mxu0 %v59
  %536 = vmatprep.subr.mxu0 0.0
  %537 = vmatpush1.msra.mxu0 %v60
  %538 = vmatprep.subr.mxu0 0.0
  %539 = vmatpush1.msra.mxu0 %v61
  %540 = vmatprep.subr.mxu0 0.0
  %541 = vmatpush1.msra.mxu0 %v62
  %542 = vmatprep.subr.mxu0 0.0
  %543 = vmatpush1.msra.mxu0 %v63
  %544 = vmatprep.subr.mxu0 0.0
  %545 = vmatpush1.msra.mxu0 %v64
  %546 = vmatprep.subr.mxu0 0.0
  %547 = vmatpush1.msra.mxu0 %v65
  %548 = vmatprep.subr.mxu0 0.0
  %549 = vmatpush1.msra.mxu0 %v66
  %550 = vmatprep.subr.mxu0 0.0
  %551 = vmatpush1.msra.mxu0 %v67
  %552 = vmatprep.subr.mxu0 0.0
  %553 = vmatpush1.msra.mxu0 %v68
  %554 = vmatprep.subr.mxu0 0.0
  %555 = vmatpush1.msra.mxu0 %v69
  %556 = vmatprep.subr.mxu0 0.0
  %557 = vmatpush1.msra.mxu0 %v70
  %558 = vmatprep.subr.mxu0 0.0
  %559 = vmatpush1.msra.mxu0 %v71
  %560 = vmatprep.subr.mxu0 0.0
  %561 = vmatpush1.msra.mxu0 %v72
  %562 = vmatprep.subr.mxu0 0.0
  %563 = vmatpush1.msra.mxu0 %v73
  %564 = vmatprep.subr.mxu0 0.0
  %565 = vmatpush1.msra.mxu0 %v74
  %566 = vmatprep.subr.mxu0 0.0
  %567 = vmatpush1.msra.mxu0 %v75
  %568 = vmatprep.subr.mxu0 0.0
  %569 = vmatpush1.msra.mxu0 %v76
  %570 = vmatprep.subr.mxu0 0.0
  %571 = vmatpush1.msra.mxu0 %v77
  %572 = vmatprep.subr.mxu0 0.0
  %573 = vmatpush1.msra.mxu0 %v78
  %574 = vmatprep.subr.mxu0 0.0
  %575 = vmatpush1.msra.mxu0 %v79
  %576 = vmatprep.mubr.f32.mxu0 %v496
  %577 = vmatmul.mubr.f32.gmra.mrb[0].mxu0 %v464
  %v578 = vpop.f32.mrb[0].mxu0
  %v579 = vadd.f32 0.0, %v578
  %v580 = vpop.f32.mrb[0].mxu0
  %581 = vmatprep.mubr.f32.mxu0 %v497
  %582 = vmatmul.mubr.f32.gmra.mrb[0].mxu0 %v465
  %v583 = vpop.f32.mrb[0].mxu0
  %v584 = vadd.f32 0.0, %v583
  %v585 = vpop.f32.mrb[0].mxu0
  %586 = vmatprep.mubr.f32.mxu0 %v498
  %587 = vmatmul.mubr.f32.gmra.mrb[0].mxu0 %v466
  %v588 = vpop.f32.mrb[0].mxu0
  %v589 = vadd.f32 0.0, %v588
  %v590 = vpop.f32.mrb[0].mxu0
  %591 = vmatprep.mubr.f32.mxu0 %v499
  %592 = vmatmul.mubr.f32.gmra.mrb[0].mxu0 %v467
  %v593 = vpop.f32.mrb[0].mxu0
  %v594 = vadd.f32 0.0, %v593
  %v595 = vpop.f32.mrb[0].mxu0
  %596 = vmatprep.mubr.f32.mxu0 %v500
  %597 = vmatmul.mubr.f32.gmra.mrb[0].mxu0 %v468
  %v598 = vpop.f32.mrb[0].mxu0
  %v599 = vadd.f32 0.0, %v598
  %v600 = vpop.f32.mrb[0].mxu0
  %601 = vdwg.mxu0
  %v602 = vadd.f32 %v443, %v579
  %v603 = vadd.f32 %v444, %v584
  %v604 = vadd.f32 %v445, %v589
  %v605 = vadd.f32 %v446, %v594
  %v606 = vadd.f32 %v447, %v599
  %607 = vst.msk [vmem:[%s2] sm:$0xff] %vm436, %v602
  %608 = vst.msk [vmem:[%s2 + $0x8] sm:$0xff] %vm436, %v603
  %609 = vst.msk [vmem:[%s2 + $0x10] sm:$0xff] %vm436, %v604
  %610 = vst.msk [vmem:[%s2 + $0x18] sm:$0xff] %vm436, %v605
  %611 = vst.msk [vmem:[%s2 + $0x20] sm:$0x3] %vm441, %v606
  // Predicated region
  $region10: #{tpu_custom_call.1} parent=0 // pred_check
    _
  $region11: #{tpu_custom_call.1} parent=0 // pred_check_branch
    %613 = sbr.rel (0) target = $region13
  $region12: #{tpu_custom_call.1} parent=0 // pred_region
    _
  $region13: #{tpu_custom_call.1} parent=0 // pred_fallthru
    _
  // Predicated region
  $region14: #{tpu_custom_call.1} parent=0 // pred_check
    _
  $region15: #{tpu_custom_call.1} parent=0 // pred_check_branch
    %615 = sbr.rel (0) target = $region17
  $region16: #{tpu_custom_call.1} parent=0 // pred_region
    _
  $region17: #{tpu_custom_call.1} parent=0 // pred_fallthru
    _
  // Predicated region
  $region18: #{tpu_custom_call.1} parent=0 // pred_check
    _
  $region19: #{tpu_custom_call.1} parent=0 // pred_check_branch
    %617 = sbr.rel (0) target = $region21
  $region20: #{tpu_custom_call.1} parent=0 // pred_region
    _
  $region21: #{tpu_custom_call.1} parent=0 // pred_fallthru
    _
  // Predicated region
  $region22: #{tpu_custom_call.1} parent=0 // pred_check
    _
  $region23: #{tpu_custom_call.1} parent=0 // pred_check_branch
    %619 = sbr.rel (0) target = $region25
  $region24: #{tpu_custom_call.1} parent=0 // pred_region
    _
  $region25: #{tpu_custom_call.1} parent=0 // pred_fallthru
    _

</llo_original>
